<compile_context>
chip_gen: v5e
topology: v5e:2x2
jax: 0.10.0
libtpu: 0.0.40
codegen_flags: <defaults>
</compile_context>

<pallas_src>
import functools

import jax
import jax.numpy as jnp
from jax.experimental import pallas as pl
from jax.experimental.pallas import tpu as pltpu

BN_EPS = 1e-5


# ----------------- Pass 1: pool + folded (backbone.head @ fc) ---------------
def _pool_fc_kernel(x_ref, w_ref, b_ref, h_ref, stats_ref, *, num_ch, hwp, inv_hw):
    # x_ref:     [TB, C*HWp] (bf16/f32) lane-dense batch tile
    # w_ref:     [C, FC]  folded weight (backbone_w @ fc_w), f32, resident
    # b_ref:     [1, FC]  folded bias, f32, resident
    # h_ref:     [TB, FC] pre-BN activations for this tile
    # stats_ref: [2, FC]  this tile's (sum, sum-of-squares) partials

    # Global average pooling: C lane-axis reductions (XLU) in f32.  Done first
    # so only C tiny [TB, 1] vectors are live while the bulk of the x tile is
    # read (low vreg pressure during the HBM-bound phase).  HWp is a multiple
    # of 128, so every slice below is a free, tile-aligned view.
    sums = []
    for c in range(num_ch):                                # static unroll, C small
        xc = x_ref[:, c * hwp:(c + 1) * hwp].astype(jnp.float32)
        sums.append(jnp.sum(xc, axis=-1, keepdims=True))   # [TB, 1]

    # Folded head+fc as C broadcast FMAs on the VPU (single [TB,C]x[C,FC]
    # product; K=C is far too small to feed the MXU usefully).
    h = b_ref[...]                                         # [1, FC] broadcasts up
    for c in range(num_ch):
        h = h + (sums[c] * inv_hw) * w_ref[c:c + 1, :]     # [TB,1]*[1,FC] FMA
    h_ref[...] = h

    # Phase-1 of two-phase BatchNorm: per-tile partial statistics.
    stats_ref[0:1, :] = jnp.sum(h, axis=0, keepdims=True)
    stats_ref[1:2, :] = jnp.sum(h * h, axis=0, keepdims=True)


# -------------- Pass 2: streaming BatchNorm1d normalize (train stats) -------
def _normalize_kernel(h_ref, scale_ref, shift_ref, out_ref):
    # out = h * (gamma * inv_std) + (beta - mean * gamma * inv_std)
    out_ref[...] = (h_ref[...] * scale_ref[...] + shift_ref[...]).astype(out_ref.dtype)


# --------------------------------- wrapper ----------------------------------
def _vmem_capacity_bytes():
    try:
        return int(pltpu.get_tpu_info().vmem_capacity_bytes)
    except Exception:                 # interpret mode / unknown target
        return 64 * 1024 * 1024       # conservative: v7x per-TensorCore VMEM


def _pick_batch_tile(batch, bytes_per_row, vmem_budget):
    """Largest batch tile (multiple of 8 dividing `batch`, capped at 512) whose
    double-buffered pipeline footprint fits the VMEM budget.  Larger tiles
    (128+ rows) also fill the MXU/VPU rows and amortize per-step overhead."""
    candidates = [t for t in range(8, min(batch, 512) + 1, 8) if batch % t == 0]
    fitting = [t for t in candidates if 2 * t * bytes_per_row <= vmem_budget]
    if fitting:
        return max(fitting)
    if candidates:
        return min(candidates)        # smallest legal tile; may still be tight
    return batch                      # tiny / odd batch -> single tile


def embedding_net_forward(x, params, *, batch_tile=None, x_dtype=jnp.bfloat16):
    """x: [B, C, H, W] (NCHW). Returns [B, fc_dim] float32 (training-mode BN)."""
    B, C, H, W = x.shape
    HW = H * W
    FC = params["fc_w"].shape[1]
    f32 = jnp.float32

    # Pad the spatial axis to a multiple of 128 so per-channel lane slices in
    # the kernel land on vreg tile boundaries (sums unaffected by the zeros).
    HWp = ((HW + 127) // 128) * 128
    x3 = x.reshape(B, C, HW)
    if HWp != HW:
        x3 = jnp.pad(x3, ((0, 0), (0, 0), (0, HWp - HW)))
    # Stream x at reduced precision; accumulation stays f32 inside the kernel.
    x_flat = x3.reshape(B, C * HWp).astype(x_dtype)

    # Fold the linear stand-in backbone head into fc (zero HBM cost; removes a
    # GEMM stage and the [TB, OUT] intermediate inside the kernel).
    w_comb = params["backbone_w"].astype(f32) @ params["fc_w"].astype(f32)      # [C, FC]
    b_comb = (params["backbone_b"].astype(f32) @ params["fc_w"].astype(f32)
              + params["fc_b"].astype(f32))                                     # [1, FC]

    # VMEM-aware tile choice + limit (v5e/v6e: 128 MiB physical; v7x: 64 MiB).
    x_bytes = jnp.dtype(x_dtype).itemsize
    vmem_budget = (_vmem_capacity_bytes() * 3) // 4
    resident = 4 * (C * FC + 3 * FC) + (2 << 20)           # folded params + margin
    bytes_per_row = C * HWp * x_bytes + FC * 4             # x tile + h tile, per row
    tb = (_pick_batch_tile(B, bytes_per_row, vmem_budget - resident)
          if batch_tile is None else batch_tile)
    if B % tb != 0:
        tb = B
    nbt = B // tb

    cparams = pltpu.CompilerParams(
        dimension_semantics=("parallel",),       # v7x: shard batch tiles over 2 TCs
        vmem_limit_bytes=int(vmem_budget),
    )

    # ---- Pass 1: pooling + folded fc, plus per-tile BN partial sums --------
    cost_1 = pl.CostEstimate(
        flops=int(B * C * HWp + 3 * B * C * FC + 4 * B * FC),
        transcendentals=0,
        bytes_accessed=int(x_bytes * B * C * HWp
                           + 4 * (C * FC + FC + B * FC + nbt * 2 * FC)),
    )
    h, stats = pl.pallas_call(
        functools.partial(_pool_fc_kernel, num_ch=C, hwp=HWp, inv_hw=1.0 / HW),
        grid=(nbt,),
        in_specs=[
            pl.BlockSpec((tb, C * HWp), lambda i: (i, 0)),    # x tile (pipelined)
            pl.BlockSpec((C, FC), lambda i: (0, 0)),          # folded weight, resident
            pl.BlockSpec((1, FC), lambda i: (0, 0)),          # folded bias, resident
        ],
        out_specs=(
            pl.BlockSpec((tb, FC), lambda i: (i, 0)),         # h tile (lane-dense)
            pl.BlockSpec((None, 2, FC), lambda i: (i, 0, 0)), # leading-tile partials
        ),
        out_shape=(
            jax.ShapeDtypeStruct((B, FC), jnp.float32),
            jax.ShapeDtypeStruct((nbt, 2, FC), jnp.float32),
        ),
        compiler_params=cparams,
        cost_estimate=cost_1,
    )(x_flat, w_comb, b_comb)

    # ---- Full-batch BatchNorm1d statistics (training mode), computed once --
    totals = jnp.sum(stats, axis=0)                          # (2, FC)
    mean = totals[0:1, :] / B
    var = jnp.maximum(totals[1:2, :] / B - mean * mean, 0.0)  # clamp cancellation
    inv_std = jax.lax.rsqrt(var + BN_EPS)
    scale = params["bn_gamma"].astype(f32) * inv_std          # (1, FC)
    shift = params["bn_beta"].astype(f32) - mean * scale      # (1, FC)

    # ---- Pass 2: pure streaming normalize ----------------------------------
    cost_2 = pl.CostEstimate(
        flops=int(2 * B * FC), transcendentals=0,
        bytes_accessed=int(4 * (2 * B * FC + 2 * FC)),
    )
    out = pl.pallas_call(
        _normalize_kernel,
        grid=(nbt,),
        in_specs=[
            pl.BlockSpec((tb, FC), lambda i: (i, 0)),        # h tile (pipelined)
            pl.BlockSpec((1, FC), lambda i: (0, 0)),         # scale, resident
            pl.BlockSpec((1, FC), lambda i: (0, 0)),         # shift, resident
        ],
        out_specs=pl.BlockSpec((tb, FC), lambda i: (i, 0)),
        out_shape=jax.ShapeDtypeStruct((B, FC), jnp.float32),
        compiler_params=cparams,
        cost_estimate=cost_2,
    )(h, scale, shift)

    return out


def init_params(key, in_ch, out_features, fc_dim):
    k1, k2, k3 = jax.random.split(key, 3)
    # Deterministic synthetic weights (stand-in for the pretrained checkpoint).
    backbone_w = jax.random.normal(k1, (in_ch, out_features), jnp.float32) * 0.1
    backbone_b = jax.random.normal(k2, (1, out_features), jnp.float32) * 0.01
    fc_w = jax.random.normal(k3, (out_features, fc_dim), jnp.float32) * 0.05
    fc_b = jnp.zeros((1, fc_dim), jnp.float32)      # nn.init.constant_(fc.bias, 0)
    bn_gamma = jnp.ones((1, fc_dim), jnp.float32)   # bn.weight = 1
    bn_beta = jnp.zeros((1, fc_dim), jnp.float32)   # bn.bias = 0
    return dict(backbone_w=backbone_w, backbone_b=backbone_b,
                fc_w=fc_w, fc_b=fc_b, bn_gamma=bn_gamma, bn_beta=bn_beta)


if __name__ == "__main__":
    B, C, H, W = 16, 4, 16, 16       # small NCHW image batch (HW=256, 128-aligned)
    OUT_FEATURES = 128               # stand-in backbone classifier output dim
    FC_DIM = 512                     # EmbeddingNet default fc_dim (lane-dense)

    key = jax.random.PRNGKey(0)
    kx, kp = jax.random.split(key)
    x = jax.random.normal(kx, (B, C, H, W), jnp.float32)
    params = init_params(kp, C, OUT_FEATURES, FC_DIM)

    # Plain-JAX reference (original op order: pool -> head -> fc -> train BN),
    # fed the same bf16-rounded input the kernel streams.
    xq = x.astype(jnp.bfloat16).astype(jnp.float32)
    pooled = jnp.mean(xq.reshape(B, C, H * W), axis=-1)
    feat = pooled @ params["backbone_w"] + params["backbone_b"]
    h_ref = feat @ params["fc_w"] + params["fc_b"]
    mean = jnp.mean(h_ref, axis=0, keepdims=True)
    var = jnp.mean((h_ref - mean) ** 2, axis=0, keepdims=True)
    ref = ((h_ref - mean) / jnp.sqrt(var + BN_EPS) * params["bn_gamma"]
           + params["bn_beta"])

    # 1) VMEM-budget-derived tile (single tile at this size).
    fwd_auto = jax.jit(embedding_net_forward)
    out_auto = jax.block_until_ready(fwd_auto(x, params))
    # 2) Forced 2-step grid to exercise the multi-tile partial-stats path.
    fwd_tiled = jax.jit(functools.partial(embedding_net_forward, batch_tile=8))
    out_tiled = jax.block_until_ready(fwd_tiled(x, params))

    for out in (out_auto, out_tiled):
        assert out.shape == (B, FC_DIM)
        assert jnp.allclose(out, ref, atol=1e-4, rtol=1e-4), (
            float(jnp.max(jnp.abs(out - ref))))

    print("KERNEL_OK")
</pallas_src>

<mosaic_0001>
module attributes {stable_mosaic.version = 11 : i64} {
  func.func @_pool_fc_kernel(%arg0: i32, %arg1: memref<16x1024xbf16, #tpu.memory_space<vmem>>, %arg2: memref<4x512xf32, #tpu.memory_space<vmem>>, %arg3: memref<1x512xf32, #tpu.memory_space<vmem>>, %arg4: memref<16x512xf32, #tpu.memory_space<vmem>>, %arg5: memref<1x2x512xf32, #tpu.memory_space<vmem>>) attributes {dimension_semantics = [#tpu.dimension_semantics<parallel>], iteration_bounds = array<i64: 1>, scalar_prefetch = 0 : i64, scratch_operands = 0 : i64, tpu.core_type = #tpu.core_type<tc>, window_params = [{transform_indices = @transform_0, window_bounds = array<i64: 16, 1024>}, {pipeline_mode = #tpu.pipeline_mode<synchronous>, transform_indices = @transform_1, window_bounds = array<i64: 4, 512>}, {pipeline_mode = #tpu.pipeline_mode<synchronous>, transform_indices = @transform_2, window_bounds = array<i64: 1, 512>}, {transform_indices = @transform_3, window_bounds = array<i64: 16, 512>}, {transform_indices = @transform_4, window_bounds = array<i64: 1, 2, 512>}]} {
    %c0 = arith.constant 0 : index
    %c0_0 = arith.constant 0 : index
    %0 = vector.load %arg1[%c0, %c0_0] : memref<16x1024xbf16, #tpu.memory_space<vmem>>, vector<16x256xbf16>
    %1 = arith.extf %0 : vector<16x256xbf16> to vector<16x256xf32>
    %cst = arith.constant dense<0.000000e+00> : vector<16xf32>
    %2 = vector.multi_reduction <add>, %1, %cst [1] : vector<16x256xf32> to vector<16xf32>
    %3 = vector.shape_cast %2 : vector<16xf32> to vector<16x1xf32>
    %c0_1 = arith.constant 0 : index
    %c256 = arith.constant 256 : index
    %4 = vector.load %arg1[%c0_1, %c256] : memref<16x1024xbf16, #tpu.memory_space<vmem>>, vector<16x256xbf16>
    %5 = arith.extf %4 : vector<16x256xbf16> to vector<16x256xf32>
    %cst_2 = arith.constant dense<0.000000e+00> : vector<16xf32>
    %6 = vector.multi_reduction <add>, %5, %cst_2 [1] : vector<16x256xf32> to vector<16xf32>
    %7 = vector.shape_cast %6 : vector<16xf32> to vector<16x1xf32>
    %c0_3 = arith.constant 0 : index
    %c512 = arith.constant 512 : index
    %8 = vector.load %arg1[%c0_3, %c512] : memref<16x1024xbf16, #tpu.memory_space<vmem>>, vector<16x256xbf16>
    %9 = arith.extf %8 : vector<16x256xbf16> to vector<16x256xf32>
    %cst_4 = arith.constant dense<0.000000e+00> : vector<16xf32>
    %10 = vector.multi_reduction <add>, %9, %cst_4 [1] : vector<16x256xf32> to vector<16xf32>
    %11 = vector.shape_cast %10 : vector<16xf32> to vector<16x1xf32>
    %c0_5 = arith.constant 0 : index
    %c768 = arith.constant 768 : index
    %12 = vector.load %arg1[%c0_5, %c768] : memref<16x1024xbf16, #tpu.memory_space<vmem>>, vector<16x256xbf16>
    %13 = arith.extf %12 : vector<16x256xbf16> to vector<16x256xf32>
    %cst_6 = arith.constant dense<0.000000e+00> : vector<16xf32>
    %14 = vector.multi_reduction <add>, %13, %cst_6 [1] : vector<16x256xf32> to vector<16xf32>
    %15 = vector.shape_cast %14 : vector<16xf32> to vector<16x1xf32>
    %c0_7 = arith.constant 0 : index
    %c0_8 = arith.constant 0 : index
    %16 = vector.load %arg3[%c0_7, %c0_8] : memref<1x512xf32, #tpu.memory_space<vmem>>, vector<1x512xf32>
    %cst_9 = arith.constant 3.906250e-03 : f32
    %17 = vector.broadcast %cst_9 : f32 to vector<16x1xf32>
    %18 = arith.mulf %3, %17 : vector<16x1xf32>
    %c0_10 = arith.constant 0 : index
    %c0_11 = arith.constant 0 : index
    %19 = vector.load %arg2[%c0_10, %c0_11] : memref<4x512xf32, #tpu.memory_space<vmem>>, vector<1x512xf32>
    %20 = vector.broadcast %18 : vector<16x1xf32> to vector<16x512xf32>
    %21 = vector.broadcast %19 : vector<1x512xf32> to vector<16x512xf32>
    %22 = arith.mulf %20, %21 : vector<16x512xf32>
    %23 = vector.broadcast %16 : vector<1x512xf32> to vector<16x512xf32>
    %24 = arith.addf %23, %22 : vector<16x512xf32>
    %cst_12 = arith.constant 3.906250e-03 : f32
    %25 = vector.broadcast %cst_12 : f32 to vector<16x1xf32>
    %26 = arith.mulf %7, %25 : vector<16x1xf32>
    %c1 = arith.constant 1 : index
    %c0_13 = arith.constant 0 : index
    %27 = vector.load %arg2[%c1, %c0_13] : memref<4x512xf32, #tpu.memory_space<vmem>>, vector<1x512xf32>
    %28 = vector.broadcast %26 : vector<16x1xf32> to vector<16x512xf32>
    %29 = vector.broadcast %27 : vector<1x512xf32> to vector<16x512xf32>
    %30 = arith.mulf %28, %29 : vector<16x512xf32>
    %31 = arith.addf %24, %30 : vector<16x512xf32>
    %cst_14 = arith.constant 3.906250e-03 : f32
    %32 = vector.broadcast %cst_14 : f32 to vector<16x1xf32>
    %33 = arith.mulf %11, %32 : vector<16x1xf32>
    %c2 = arith.constant 2 : index
    %c0_15 = arith.constant 0 : index
    %34 = vector.load %arg2[%c2, %c0_15] : memref<4x512xf32, #tpu.memory_space<vmem>>, vector<1x512xf32>
    %35 = vector.broadcast %33 : vector<16x1xf32> to vector<16x512xf32>
    %36 = vector.broadcast %34 : vector<1x512xf32> to vector<16x512xf32>
    %37 = arith.mulf %35, %36 : vector<16x512xf32>
    %38 = arith.addf %31, %37 : vector<16x512xf32>
    %cst_16 = arith.constant 3.906250e-03 : f32
    %39 = vector.broadcast %cst_16 : f32 to vector<16x1xf32>
    %40 = arith.mulf %15, %39 : vector<16x1xf32>
    %c3 = arith.constant 3 : index
    %c0_17 = arith.constant 0 : index
    %41 = vector.load %arg2[%c3, %c0_17] : memref<4x512xf32, #tpu.memory_space<vmem>>, vector<1x512xf32>
    %42 = vector.broadcast %40 : vector<16x1xf32> to vector<16x512xf32>
    %43 = vector.broadcast %41 : vector<1x512xf32> to vector<16x512xf32>
    %44 = arith.mulf %42, %43 : vector<16x512xf32>
    %45 = arith.addf %38, %44 : vector<16x512xf32>
    %c0_18 = arith.constant 0 : index
    %c0_19 = arith.constant 0 : index
    %46 = vector.load %arg4[%c0_18, %c0_19] : memref<16x512xf32, #tpu.memory_space<vmem>>, vector<16x512xf32>
    tpu.vector_store %arg4[%c0_18, %c0_19], %45 {strides = array<i32>} : memref<16x512xf32, #tpu.memory_space<vmem>>, vector<16x512xf32>,
    %cst_20 = arith.constant dense<0.000000e+00> : vector<512xf32>
    %47 = vector.multi_reduction <add>, %45, %cst_20 [0] : vector<16x512xf32> to vector<512xf32>
    %48 = vector.shape_cast %47 : vector<512xf32> to vector<1x512xf32>
    %c0_21 = arith.constant 0 : index
    %c0_22 = arith.constant 0 : index
    %c0_23 = arith.constant 0 : index
    %49 = vector.load %arg5[%c0_21, %c0_22, %c0_23] : memref<1x2x512xf32, #tpu.memory_space<vmem>>, vector<1x1x512xf32>
    %50 = vector.shape_cast %49 : vector<1x1x512xf32> to vector<1x512xf32>
    %51 = vector.shape_cast %48 : vector<1x512xf32> to vector<1x1x512xf32>
    tpu.vector_store %arg5[%c0_21, %c0_22, %c0_23], %51 {strides = array<i32>} : memref<1x2x512xf32, #tpu.memory_space<vmem>>, vector<1x1x512xf32>,
    %52 = arith.mulf %45, %45 : vector<16x512xf32>
    %cst_24 = arith.constant dense<0.000000e+00> : vector<512xf32>
    %53 = vector.multi_reduction <add>, %52, %cst_24 [0] : vector<16x512xf32> to vector<512xf32>
    %54 = vector.shape_cast %53 : vector<512xf32> to vector<1x512xf32>
    %c0_25 = arith.constant 0 : index
    %c1_26 = arith.constant 1 : index
    %c0_27 = arith.constant 0 : index
    %55 = vector.load %arg5[%c0_25, %c1_26, %c0_27] : memref<1x2x512xf32, #tpu.memory_space<vmem>>, vector<1x1x512xf32>
    %56 = vector.shape_cast %55 : vector<1x1x512xf32> to vector<1x512xf32>
    %57 = vector.shape_cast %54 : vector<1x512xf32> to vector<1x1x512xf32>
    tpu.vector_store %arg5[%c0_25, %c1_26, %c0_27], %57 {strides = array<i32>} : memref<1x2x512xf32, #tpu.memory_space<vmem>>, vector<1x1x512xf32>,
    return
  }
  func.func @transform_0(%arg0: i32) -> (i32, i32) {
    %c0_i32 = arith.constant 0 : i32
    %c0_i32_0 = arith.constant 0 : i32
    return %arg0, %c0_i32 : i32, i32
  }
  func.func @transform_1(%arg0: i32) -> (i32, i32) {
    %c0_i32 = arith.constant 0 : i32
    %c0_i32_0 = arith.constant 0 : i32
    %c0_i32_1 = arith.constant 0 : i32
    return %c0_i32, %c0_i32_0 : i32, i32
  }
  func.func @transform_2(%arg0: i32) -> (i32, i32) {
    %c0_i32 = arith.constant 0 : i32
    %c0_i32_0 = arith.constant 0 : i32
    %c0_i32_1 = arith.constant 0 : i32
    return %c0_i32, %c0_i32_0 : i32, i32
  }
  func.func @transform_3(%arg0: i32) -> (i32, i32) {
    %c0_i32 = arith.constant 0 : i32
    %c0_i32_0 = arith.constant 0 : i32
    return %arg0, %c0_i32 : i32, i32
  }
  func.func @transform_4(%arg0: i32) -> (i32, i32, i32) {
    %c0_i32 = arith.constant 0 : i32
    %c0_i32_0 = arith.constant 0 : i32
    %c0_i32_1 = arith.constant 0 : i32
    return %arg0, %c0_i32, %c0_i32_0 : i32, i32, i32
  }
}

module attributes {stable_mosaic.version = 11 : i64} {
  func.func @_normalize_kernel(%arg0: i32, %arg1: memref<16x512xf32, #tpu.memory_space<vmem>>, %arg2: memref<1x512xf32, #tpu.memory_space<vmem>>, %arg3: memref<1x512xf32, #tpu.memory_space<vmem>>, %arg4: memref<16x512xf32, #tpu.memory_space<vmem>>) attributes {dimension_semantics = [#tpu.dimension_semantics<parallel>], iteration_bounds = array<i64: 1>, scalar_prefetch = 0 : i64, scratch_operands = 0 : i64, tpu.core_type = #tpu.core_type<tc>, window_params = [{transform_indices = @transform_0, window_bounds = array<i64: 16, 512>}, {pipeline_mode = #tpu.pipeline_mode<synchronous>, transform_indices = @transform_1, window_bounds = array<i64: 1, 512>}, {pipeline_mode = #tpu.pipeline_mode<synchronous>, transform_indices = @transform_2, window_bounds = array<i64: 1, 512>}, {transform_indices = @transform_3, window_bounds = array<i64: 16, 512>}]} {
    %c0 = arith.constant 0 : index
    %c0_0 = arith.constant 0 : index
    %0 = vector.load %arg1[%c0, %c0_0] : memref<16x512xf32, #tpu.memory_space<vmem>>, vector<16x512xf32>
    %c0_1 = arith.constant 0 : index
    %c0_2 = arith.constant 0 : index
    %1 = vector.load %arg2[%c0_1, %c0_2] : memref<1x512xf32, #tpu.memory_space<vmem>>, vector<1x512xf32>
    %2 = vector.broadcast %1 : vector<1x512xf32> to vector<16x512xf32>
    %3 = arith.mulf %0, %2 : vector<16x512xf32>
    %c0_3 = arith.constant 0 : index
    %c0_4 = arith.constant 0 : index
    %4 = vector.load %arg3[%c0_3, %c0_4] : memref<1x512xf32, #tpu.memory_space<vmem>>, vector<1x512xf32>
    %5 = vector.broadcast %4 : vector<1x512xf32> to vector<16x512xf32>
    %6 = arith.addf %3, %5 : vector<16x512xf32>
    %c0_5 = arith.constant 0 : index
    %c0_6 = arith.constant 0 : index
    %7 = vector.load %arg4[%c0_5, %c0_6] : memref<16x512xf32, #tpu.memory_space<vmem>>, vector<16x512xf32>
    tpu.vector_store %arg4[%c0_5, %c0_6], %6 {strides = array<i32>} : memref<16x512xf32, #tpu.memory_space<vmem>>, vector<16x512xf32>,
    return
  }
  func.func @transform_0(%arg0: i32) -> (i32, i32) {
    %c0_i32 = arith.constant 0 : i32
    %c0_i32_0 = arith.constant 0 : i32
    return %arg0, %c0_i32 : i32, i32
  }
  func.func @transform_1(%arg0: i32) -> (i32, i32) {
    %c0_i32 = arith.constant 0 : i32
    %c0_i32_0 = arith.constant 0 : i32
    %c0_i32_1 = arith.constant 0 : i32
    return %c0_i32, %c0_i32_0 : i32, i32
  }
  func.func @transform_2(%arg0: i32) -> (i32, i32) {
    %c0_i32 = arith.constant 0 : i32
    %c0_i32_0 = arith.constant 0 : i32
    %c0_i32_1 = arith.constant 0 : i32
    return %c0_i32, %c0_i32_0 : i32, i32
  }
  func.func @transform_3(%arg0: i32) -> (i32, i32) {
    %c0_i32 = arith.constant 0 : i32
    %c0_i32_0 = arith.constant 0 : i32
    return %arg0, %c0_i32 : i32, i32
  }
}

</mosaic_0001>

<llo_original>
// kernel: embedding_net_forward.3
$region0: #{embedding_net_forward.3}
  #allocation0 [shape = 'u32[]', space=smem, size = 0x4, offset = 0x4, fixed_abs, tag = 'smem constant byte address 0x4 - core index']
  #allocation1 [shape = 'u32[72,128]{1,0:T(1,128)}', space=vmem, size = 0x9000, scoped, tag = 'internal scratch']
  %s0 = inlined_call_operand.vmem [shape: f32[16,512], index: 0, kind: input, shape index: {}]
  %s1 = inlined_call_operand.vmem [shape: f32[1,512], index: 1, kind: input, shape index: {}]
  %s2 = inlined_call_operand.vmem [shape: f32[1,512], index: 2, kind: input, shape index: {}]
  %s3 = inlined_call_operand.hbm [shape: f32[16,512], index: 3, kind: output, shape index: {}]
  %s4 = sld [smem:[#allocation0]]
  $region22: #{embedding_net_forward.3} parent=0
    _
  %s6 = ssub.s32 1, %s4
  %s7 = scalar_select 0, %s6, %s4
  $region1: #{embedding_net_forward.3} parent=0
    #allocation2 [shape = 'u8[32768]{0}', space=vmem, size = 0x8000, scoped, tag = 'output window, operand 0, single buffered']
    #allocation3 [shape = 's32[1]{0}', space=sflag, size = 0x4, scoped, tag = 'scoped memory for embedding_net_forward.3']
    %8 = vsyncpa [#allocation3], 0
    // Predicated region
    $region2: #{embedding_net_forward.3} parent=1 // pred_check
      _
    $region3: #{embedding_net_forward.3} parent=1 // pred_check_branch
      %10 = sbr.rel (0) target = $region5
    $region4: #{embedding_net_forward.3} parent=1 // pred_region
      _
    $region5: #{embedding_net_forward.3} parent=1 // pred_fallthru
      _
    // Predicated region
    $region6: #{embedding_net_forward.3} parent=1 // pred_check
      _
    $region7: #{embedding_net_forward.3} parent=1 // pred_check_branch
      %12 = sbr.rel (0) target = $region9
    $region8: #{embedding_net_forward.3} parent=1 // pred_region
      _
    $region9: #{embedding_net_forward.3} parent=1 // pred_fallthru
      _
    // Predicated region
    $region10: #{embedding_net_forward.3} parent=1 // pred_check
      _
    $region11: #{embedding_net_forward.3} parent=1 // pred_check_branch
      %14 = sbr.rel (0) target = $region13
    $region12: #{embedding_net_forward.3} parent=1 // pred_region
      _
    $region13: #{embedding_net_forward.3} parent=1 // pred_fallthru
      _
    %v15 = vld [vmem:[%s0] sm:$0xff]
    %v16 = vld [vmem:[%s0 + $0x8] sm:$0xff]
    %v17 = vld [vmem:[%s0 + $0x10] sm:$0xff]
    %v18 = vld [vmem:[%s0 + $0x18] sm:$0xff]
    %v19 = vld [vmem:[%s0 + $0x20] sm:$0xff]
    %v20 = vld [vmem:[%s0 + $0x28] sm:$0xff]
    %v21 = vld [vmem:[%s0 + $0x30] sm:$0xff]
    %v22 = vld [vmem:[%s0 + $0x38] sm:$0xff]
    %v23 = vld [vmem:[%s1] sm:$0xf]
    %v25 = vperm.slane %v23, 0
    %v26 = vperm.slane %v23, 1
    %v27 = vperm.slane %v23, 2
    %v28 = vperm.slane %v23, 3
    %v33 = vmul.f32 %v15, %v25
    %v34 = vmul.f32 %v16, %v26
    %v35 = vmul.f32 %v17, %v27
    %v36 = vmul.f32 %v18, %v28
    %v37 = vmul.f32 %v19, %v25
    %v38 = vmul.f32 %v20, %v26
    %v39 = vmul.f32 %v21, %v27
    %v40 = vmul.f32 %v22, %v28
    %v41 = vld [vmem:[%s2] sm:$0xf]
    %v43 = vperm.slane %v41, 0
    %v44 = vperm.slane %v41, 1
    %v45 = vperm.slane %v41, 2
    %v46 = vperm.slane %v41, 3
    %v51 = vadd.f32 %v33, %v43
    %v52 = vadd.f32 %v34, %v44
    %v53 = vadd.f32 %v35, %v45
    %v54 = vadd.f32 %v36, %v46
    %v55 = vadd.f32 %v37, %v43
    %v56 = vadd.f32 %v38, %v44
    %v57 = vadd.f32 %v39, %v45
    %v58 = vadd.f32 %v40, %v46
    %59 = vst [vmem:[#allocation2] sm:$0xff] %v51
    %60 = vst [vmem:[#allocation2 + $0x8] sm:$0xff] %v52
    %61 = vst [vmem:[#allocation2 + $0x10] sm:$0xff] %v53
    %62 = vst [vmem:[#allocation2 + $0x18] sm:$0xff] %v54
    %63 = vst [vmem:[#allocation2 + $0x20] sm:$0xff] %v55
    %64 = vst [vmem:[#allocation2 + $0x28] sm:$0xff] %v56
    %65 = vst [vmem:[#allocation2 + $0x30] sm:$0xff] %v57
    %66 = vst [vmem:[#allocation2 + $0x38] sm:$0xff] %v58
    // Predicated region
    $region14: #{embedding_net_forward.3} parent=1 // pred_check
      _
    $region15: #{embedding_net_forward.3} parent=1 // pred_check_branch
      %68 = sbr.rel (0) target = $region17
    $region16: #{embedding_net_forward.3} parent=1 // pred_region
      %70 = vsyncadd [#allocation3], 0
      %s71 = sshll.u32 [#allocation2], 4
      %s72 = int_to_ptr.vmem [resolvable:$true] %s71
      %s73 = sshll.u32 %s3, 4
      %s74 = int_to_ptr.hbm [resolvable:$true] %s73
      %79 = dma.vmem_to_hbm [thread:$0]  %s72, 1024, %s74, [#allocation3], 512, 512, 32
    $region17: #{embedding_net_forward.3} parent=1 // pred_fallthru
      _
    // Predicated region
    $region18: #{embedding_net_forward.3} parent=1 // pred_check
      _
    $region19: #{embedding_net_forward.3} parent=1 // pred_check_branch
      %81 = sbr.rel (0) target = $region21
    $region20: #{embedding_net_forward.3} parent=1 // pred_region
      %83 = dma.done [#allocation3], 1024
    $region21: #{embedding_net_forward.3} parent=1 // pred_fallthru
      _
    %84 = vsyncpa [#allocation3], 1

// kernel: embedding_net_forward.2
$region0: #{embedding_net_forward.2}
  #allocation0 [shape = 'u32[]', space=smem, size = 0x4, offset = 0x4, fixed_abs, tag = 'smem constant byte address 0x4 - core index']
  #allocation1 [shape = 'u32[72,128]{1,0:T(1,128)}', space=vmem, size = 0x9000, scoped, tag = 'internal scratch']
  %s0 = inlined_call_operand.vmem [shape: bf16[16,1024], index: 0, kind: input, shape index: {}]
  %s1 = inlined_call_operand.vmem [shape: f32[4,512], index: 1, kind: input, shape index: {}]
  %s2 = inlined_call_operand.vmem [shape: f32[1,512], index: 2, kind: input, shape index: {}]
  %s3 = inlined_call_operand.vmem [shape: f32[16,512], index: 3, kind: output, shape index: {0}]
  %s4 = inlined_call_operand.vmem [shape: f32[1,2,512], index: 4, kind: output, shape index: {1}]
  %5 = xla_tuple %s3, %s4
  %s6 = sld [smem:[#allocation0]]
  $region30: #{embedding_net_forward.2} parent=0
    _
  %s8 = ssub.s32 1, %s6
  %s9 = scalar_select 0, %s8, %s6
  // Predicated region
  $region2: #{embedding_net_forward.2} parent=0 // pred_check
    _
  $region3: #{embedding_net_forward.2} parent=0 // pred_check_branch
    %11 = sbr.rel (0) target = $region5
  $region4: #{embedding_net_forward.2} parent=0 // pred_region
    _
  $region5: #{embedding_net_forward.2} parent=0 // pred_fallthru
    _
  // Predicated region
  $region6: #{embedding_net_forward.2} parent=0 // pred_check
    _
  $region7: #{embedding_net_forward.2} parent=0 // pred_check_branch
    %13 = sbr.rel (0) target = $region9
  $region8: #{embedding_net_forward.2} parent=0 // pred_region
    _
  $region9: #{embedding_net_forward.2} parent=0 // pred_fallthru
    _
  // Predicated region
  $region10: #{embedding_net_forward.2} parent=0 // pred_check
    _
  $region11: #{embedding_net_forward.2} parent=0 // pred_check_branch
    %15 = sbr.rel (0) target = $region13
  $region12: #{embedding_net_forward.2} parent=0 // pred_region
    _
  $region13: #{embedding_net_forward.2} parent=0 // pred_fallthru
    _
  %v16 = vld [vmem:[%s0] sm:$0xff]
  %v17 = vld [vmem:[%s0 + $0x20] sm:$0xff]
  %v18 = vunpack.c.l.bf16 %v16
  %v19 = vunpack.c.h.bf16 %v16
  %v20 = vunpack.c.l.bf16 %v17
  %v21 = vunpack.c.h.bf16 %v17
  %v22 = vadd.f32 %v18, %v19
  %23 = vadd.xlane.f32.xlu0 %v22
  %v24 = vpop.xlane.xlu0 %23
  %v25 = vadd.f32 %v20, %v21
  %26 = vadd.xlane.f32.xlu0 %v25
  %v27 = vpop.xlane.xlu0 %26
  %v28 = vld [vmem:[%s0 + $0x8] sm:$0xff]
  %v29 = vld [vmem:[%s0 + $0x28] sm:$0xff]
  %v30 = vunpack.c.l.bf16 %v28
  %v31 = vunpack.c.h.bf16 %v28
  %v32 = vunpack.c.l.bf16 %v29
  %v33 = vunpack.c.h.bf16 %v29
  %v34 = vadd.f32 %v30, %v31
  %35 = vadd.xlane.f32.xlu0 %v34
  %v36 = vpop.xlane.xlu0 %35
  %v37 = vadd.f32 %v32, %v33
  %38 = vadd.xlane.f32.xlu0 %v37
  %v39 = vpop.xlane.xlu0 %38
  %v40 = vld [vmem:[%s0 + $0x10] sm:$0xff]
  %v41 = vld [vmem:[%s0 + $0x30] sm:$0xff]
  %v42 = vunpack.c.l.bf16 %v40
  %v43 = vunpack.c.h.bf16 %v40
  %v44 = vunpack.c.l.bf16 %v41
  %v45 = vunpack.c.h.bf16 %v41
  %v46 = vadd.f32 %v42, %v43
  %47 = vadd.xlane.f32.xlu0 %v46
  %v48 = vpop.xlane.xlu0 %47
  %v49 = vadd.f32 %v44, %v45
  %50 = vadd.xlane.f32.xlu0 %v49
  %v51 = vpop.xlane.xlu0 %50
  %v52 = vld [vmem:[%s0 + $0x18] sm:$0xff]
  %v53 = vld [vmem:[%s0 + $0x38] sm:$0xff]
  %v54 = vunpack.c.l.bf16 %v52
  %v55 = vunpack.c.h.bf16 %v52
  %v56 = vunpack.c.l.bf16 %v53
  %v57 = vunpack.c.h.bf16 %v53
  %v58 = vadd.f32 %v54, %v55
  %59 = vadd.xlane.f32.xlu0 %v58
  %v60 = vpop.xlane.xlu0 %59
  %v61 = vadd.f32 %v56, %v57
  %62 = vadd.xlane.f32.xlu0 %v61
  %v63 = vpop.xlane.xlu0 %62
  %v64 = vld [vmem:[%s2] sm:$0xf]
  %v65 = vmul.f32 %v24, 0.00390625
  %v66 = vmul.f32 %v27, 0.00390625
  %v67 = vld [vmem:[%s1] ss:$4 sm:$0xf]
  %v69 = vperm.slane %v67, 0
  %v70 = vperm.slane %v67, 1
  %v71 = vperm.slane %v67, 2
  %v72 = vperm.slane %v67, 3
  %v77 = vmul.f32 %v65, %v69
  %v78 = vmul.f32 %v65, %v70
  %v79 = vmul.f32 %v65, %v71
  %v80 = vmul.f32 %v65, %v72
  %v81 = vmul.f32 %v66, %v69
  %v82 = vmul.f32 %v66, %v70
  %v83 = vmul.f32 %v66, %v71
  %v84 = vmul.f32 %v66, %v72
  %v86 = vperm.slane %v64, 0
  %v87 = vperm.slane %v64, 1
  %v88 = vperm.slane %v64, 2
  %v89 = vperm.slane %v64, 3
  %v94 = vadd.f32 %v86, %v77
  %v95 = vadd.f32 %v87, %v78
  %v96 = vadd.f32 %v88, %v79
  %v97 = vadd.f32 %v89, %v80
  %v98 = vadd.f32 %v86, %v81
  %v99 = vadd.f32 %v87, %v82
  %v100 = vadd.f32 %v88, %v83
  %v101 = vadd.f32 %v89, %v84
  %v102 = vmul.f32 %v36, 0.00390625
  %v103 = vmul.f32 %v39, 0.00390625
  %s104 = scalar_lea.vmem %s1, 1
  %v105 = vld [vmem:[%s104] ss:$4 sm:$0xf]
  %v107 = vperm.slane %v105, 0
  %v108 = vperm.slane %v105, 1
  %v109 = vperm.slane %v105, 2
  %v110 = vperm.slane %v105, 3
  %v115 = vmul.f32 %v102, %v107
  %v116 = vmul.f32 %v102, %v108
  %v117 = vmul.f32 %v102, %v109
  %v118 = vmul.f32 %v102, %v110
  %v119 = vmul.f32 %v103, %v107
  %v120 = vmul.f32 %v103, %v108
  %v121 = vmul.f32 %v103, %v109
  %v122 = vmul.f32 %v103, %v110
  %v123 = vadd.f32 %v94, %v115
  %v124 = vadd.f32 %v95, %v116
  %v125 = vadd.f32 %v96, %v117
  %v126 = vadd.f32 %v97, %v118
  %v127 = vadd.f32 %v98, %v119
  %v128 = vadd.f32 %v99, %v120
  %v129 = vadd.f32 %v100, %v121
  %v130 = vadd.f32 %v101, %v122
  %v131 = vmul.f32 %v48, 0.00390625
  %v132 = vmul.f32 %v51, 0.00390625
  %s133 = scalar_lea.vmem %s1, 2
  %v134 = vld [vmem:[%s133] ss:$4 sm:$0xf]
  %v136 = vperm.slane %v134, 0
  %v137 = vperm.slane %v134, 1
  %v138 = vperm.slane %v134, 2
  %v139 = vperm.slane %v134, 3
  %v144 = vmul.f32 %v131, %v136
  %v145 = vmul.f32 %v131, %v137
  %v146 = vmul.f32 %v131, %v138
  %v147 = vmul.f32 %v131, %v139
  %v148 = vmul.f32 %v132, %v136
  %v149 = vmul.f32 %v132, %v137
  %v150 = vmul.f32 %v132, %v138
  %v151 = vmul.f32 %v132, %v139
  %v152 = vadd.f32 %v123, %v144
  %v153 = vadd.f32 %v124, %v145
  %v154 = vadd.f32 %v125, %v146
  %v155 = vadd.f32 %v126, %v147
  %v156 = vadd.f32 %v127, %v148
  %v157 = vadd.f32 %v128, %v149
  %v158 = vadd.f32 %v129, %v150
  %v159 = vadd.f32 %v130, %v151
  %v160 = vmul.f32 %v60, 0.00390625
  %v161 = vmul.f32 %v63, 0.00390625
  %s162 = scalar_lea.vmem %s1, 3
  %v163 = vld [vmem:[%s162] ss:$4 sm:$0xf]
  %v165 = vperm.slane %v163, 0
  %v166 = vperm.slane %v163, 1
  %v167 = vperm.slane %v163, 2
  %v168 = vperm.slane %v163, 3
  %v173 = vmul.f32 %v160, %v165
  %v174 = vmul.f32 %v160, %v166
  %v175 = vmul.f32 %v160, %v167
  %v176 = vmul.f32 %v160, %v168
  %v177 = vmul.f32 %v161, %v165
  %v178 = vmul.f32 %v161, %v166
  %v179 = vmul.f32 %v161, %v167
  %v180 = vmul.f32 %v161, %v168
  %v181 = vadd.f32 %v152, %v173
  %v182 = vadd.f32 %v153, %v174
  %v183 = vadd.f32 %v154, %v175
  %v184 = vadd.f32 %v155, %v176
  %v185 = vadd.f32 %v156, %v177
  %v186 = vadd.f32 %v157, %v178
  %v187 = vadd.f32 %v158, %v179
  %v188 = vadd.f32 %v159, %v180
  %189 = vst [vmem:[%s3] sm:$0xff] %v181
  %190 = vst [vmem:[%s3 + $0x8] sm:$0xff] %v182
  %191 = vst [vmem:[%s3 + $0x10] sm:$0xff] %v183
  %192 = vst [vmem:[%s3 + $0x18] sm:$0xff] %v184
  %193 = vst [vmem:[%s3 + $0x20] sm:$0xff] %v185
  %194 = vst [vmem:[%s3 + $0x28] sm:$0xff] %v186
  %195 = vst [vmem:[%s3 + $0x30] sm:$0xff] %v187
  %196 = vst [vmem:[%s3 + $0x38] sm:$0xff] %v188
  %v197 = vadd.f32 %v181, %v185
  %v198 = vrot.slane %v197, 4
  %v199 = vadd.f32 %v197, %v198
  %v200 = vrot.slane %v199, 2
  %v201 = vadd.f32 %v199, %v200
  %v202 = vrot.slane %v201, 1
  %v203 = vadd.f32 %v201, %v202
  %v204 = vadd.f32 %v182, %v186
  %v205 = vrot.slane %v204, 4
  %v206 = vadd.f32 %v204, %v205
  %v207 = vrot.slane %v206, 2
  %v208 = vadd.f32 %v206, %v207
  %v209 = vrot.slane %v208, 1
  %v210 = vadd.f32 %v208, %v209
  %v211 = vadd.f32 %v183, %v187
  %v212 = vrot.slane %v211, 4
  %v213 = vadd.f32 %v211, %v212
  %v214 = vrot.slane %v213, 2
  %v215 = vadd.f32 %v213, %v214
  %v216 = vrot.slane %v215, 1
  %v217 = vadd.f32 %v215, %v216
  %v218 = vadd.f32 %v184, %v188
  %v219 = vrot.slane %v218, 4
  %v220 = vadd.f32 %v218, %v219
  %v221 = vrot.slane %v220, 2
  %v222 = vadd.f32 %v220, %v221
  %v223 = vrot.slane %v222, 1
  %v224 = vadd.f32 %v222, %v223
  %v229 = vrot.slane %v210, 7
  %v230 = vrot.slane %v217, 6
  %v231 = vrot.slane %v224, 5
  %vm232 = vcmask 1040384
  %v233 = vsel %vm232, %v203, %v229
  %vm234 = vcmask 1042434
  %v235 = vsel %vm234, %v230, %v231
  %vm236 = vcmask 1041408
  %v237 = vsel %vm236, %v233, %v235
  %v239 = vlaneseq
  %vm240 = vcmp.ge.s32.totalorder %v239, 0
  %vm241 = vcmp.lt.s32.totalorder %v239, 512
  %vm242 = vmand %vm240, %vm241
  %243 = vst.msk [vmem:[%s4] ss:$2 sm:$0xf] %vm242, %v237
  %v244 = vmul.f32 %v181, %v181
  %v245 = vmul.f32 %v182, %v182
  %v246 = vmul.f32 %v183, %v183
  %v247 = vmul.f32 %v184, %v184
  %v248 = vmul.f32 %v185, %v185
  %v249 = vmul.f32 %v186, %v186
  %v250 = vmul.f32 %v187, %v187
  %v251 = vmul.f32 %v188, %v188
  %v252 = vadd.f32 %v244, %v248
  %v253 = vrot.slane %v252, 4
  %v254 = vadd.f32 %v252, %v253
  %v255 = vrot.slane %v254, 2
  %v256 = vadd.f32 %v254, %v255
  %v257 = vrot.slane %v256, 1
  %v258 = vadd.f32 %v256, %v257
  %v259 = vadd.f32 %v245, %v249
  %v260 = vrot.slane %v259, 4
  %v261 = vadd.f32 %v259, %v260
  %v262 = vrot.slane %v261, 2
  %v263 = vadd.f32 %v261, %v262
  %v264 = vrot.slane %v263, 1
  %v265 = vadd.f32 %v263, %v264
  %v266 = vadd.f32 %v246, %v250
  %v267 = vrot.slane %v266, 4
  %v268 = vadd.f32 %v266, %v267
  %v269 = vrot.slane %v268, 2
  %v270 = vadd.f32 %v268, %v269
  %v271 = vrot.slane %v270, 1
  %v272 = vadd.f32 %v270, %v271
  %v273 = vadd.f32 %v247, %v251
  %v274 = vrot.slane %v273, 4
  %v275 = vadd.f32 %v273, %v274
  %v276 = vrot.slane %v275, 2
  %v277 = vadd.f32 %v275, %v276
  %v278 = vrot.slane %v277, 1
  %v279 = vadd.f32 %v277, %v278
  %v284 = vrot.slane %v265, 7
  %v285 = vrot.slane %v272, 6
  %v286 = vrot.slane %v279, 5
  %v287 = vsel %vm232, %v258, %v284
  %v288 = vsel %vm234, %v285, %v286
  %v289 = vsel %vm236, %v287, %v288
  %s291 = scalar_lea.vmem %s4, 1
  %292 = vst.msk [vmem:[%s291] ss:$2 sm:$0xf] %vm242, %v289
  // Predicated region
  $region14: #{embedding_net_forward.2} parent=0 // pred_check
    _
  $region15: #{embedding_net_forward.2} parent=0 // pred_check_branch
    %294 = sbr.rel (0) target = $region17
  $region16: #{embedding_net_forward.2} parent=0 // pred_region
    _
  $region17: #{embedding_net_forward.2} parent=0 // pred_fallthru
    _
  // Predicated region
  $region18: #{embedding_net_forward.2} parent=0 // pred_check
    _
  $region19: #{embedding_net_forward.2} parent=0 // pred_check_branch
    %296 = sbr.rel (0) target = $region21
  $region20: #{embedding_net_forward.2} parent=0 // pred_region
    _
  $region21: #{embedding_net_forward.2} parent=0 // pred_fallthru
    _
  // Predicated region
  $region22: #{embedding_net_forward.2} parent=0 // pred_check
    _
  $region23: #{embedding_net_forward.2} parent=0 // pred_check_branch
    %298 = sbr.rel (0) target = $region25
  $region24: #{embedding_net_forward.2} parent=0 // pred_region
    _
  $region25: #{embedding_net_forward.2} parent=0 // pred_fallthru
    _
  // Predicated region
  $region26: #{embedding_net_forward.2} parent=0 // pred_check
    _
  $region27: #{embedding_net_forward.2} parent=0 // pred_check_branch
    %300 = sbr.rel (0) target = $region29
  $region28: #{embedding_net_forward.2} parent=0 // pred_region
    _
  $region29: #{embedding_net_forward.2} parent=0 // pred_fallthru
    _

</llo_original>
